<compile_context>
chip_gen: v7x
topology: tpu7x:2x2x1
jax: 0.10.0
libtpu: 0.0.40
codegen_flags: <defaults>
</compile_context>

<pallas_src>
import functools

import jax
import jax.numpy as jnp
from jax.experimental import pallas as pl
from jax.experimental.pallas import tpu as pltpu


# ----------------------------------------------------------------------------
# Fast path: non-overlapping pooling (stride == kernel_size, the AvgPool2d
# default).  Pure VPU adds, lane-dense channels-last tiles, no MXU.
# ----------------------------------------------------------------------------
def _pool_nonoverlap_kernel(xr_ref, xi_ref, or_ref, oi_ref, *, k, P):
    # x*_ref block: (Hob, k, Wo, k*P)  -> tiled dims (Wo sublanes, k*P lanes)
    # o*_ref block: (Hob, Wo, P)       -> tiled dims (Wo sublanes, P   lanes)
    scale = 1.0 / float(k * k)

    def pool(ref):
        x = ref[...]                               # (Hob, k, Wo, k*P)
        acc = x[:, 0]                              # sum k pooled input rows
        for di in range(1, k):                     # (outer dim -> slab adds)
            acc = acc + x[:, di]                   # (Hob, Wo, k*P)
        out = acc[..., 0:P]                        # sum k column groups
        for dj in range(1, k):                     # (static contiguous lane slices)
            out = out + acc[..., dj * P:(dj + 1) * P]
        return out * scale                         # (Hob, Wo, P)

    or_ref[...] = pool(xr_ref)
    oi_ref[...] = pool(xi_ref)


def _choose_row_block(Ho, k, Wo, P, budget_bytes=8 * 1024 * 1024):
    """Pick Hob dividing Ho: biggest block under a conservative VMEM budget
    (2 components x 2 pipeline buffers, padded (8,128) tiling), while keeping
    >= 2 grid steps when possible so v7x's two TensorCores both get work."""
    def padded_bytes(lead, sub, lane):
        return lead * (-(-sub // 8) * 8) * (-(-lane // 128) * 128) * 4

    per_row = 2 * 2 * (padded_bytes(k, Wo, k * P) + padded_bytes(1, Wo, P))
    hob = max(1, min(Ho, budget_bytes // max(per_row, 1)))
    if hob >= Ho and Ho >= 2:
        hob = (Ho + 1) // 2
    while Ho % hob:
        hob -= 1
    return hob


# ----------------------------------------------------------------------------
# Fallback path: overlapping / gapped pooling (stride != kernel_size).
# Keeps the (previously validated) banded-matrix MXU kernel.
# TODO(synk): this non-default path is not lane-dense / plane-batched.
# ----------------------------------------------------------------------------
def _matmul_pool_kernel(a_ref, x_ref, b_ref, o_ref):
    x = x_ref[0]                                                        # (H, W)
    tmp = jnp.dot(a_ref[...], x, preferred_element_type=jnp.float32)   # (Ho, W)
    out = jnp.dot(tmp, b_ref[...], preferred_element_type=jnp.float32)  # (Ho, Wo)
    o_ref[0] = out.astype(o_ref.dtype)


def _pooling_matrices(H, W, k, s, Ho, Wo):
    rows = jnp.arange(H)[None, :]
    oh = jnp.arange(Ho)[:, None] * s
    A = ((rows >= oh) & (rows < oh + k)).astype(jnp.float32) / float(k)
    cols = jnp.arange(W)[:, None]
    ow = jnp.arange(Wo)[None, :] * s
    B = ((cols >= ow) & (cols < ow + k)).astype(jnp.float32) / float(k)
    return A, B


def _avg_pool_matmul(v, k, s, Ho, Wo):
    N, C, H, W = v.shape
    planes = v.reshape(N * C, H, W)
    A, B = _pooling_matrices(H, W, k, s, Ho, Wo)
    out = pl.pallas_call(
        _matmul_pool_kernel,
        out_shape=jax.ShapeDtypeStruct((N * C, Ho, Wo), jnp.float32),
        grid_spec=pltpu.PrefetchScalarGridSpec(
            num_scalar_prefetch=0,
            grid=(N * C,),
            in_specs=[
                pl.BlockSpec((Ho, H), lambda i: (0, 0)),
                pl.BlockSpec((1, H, W), lambda i: (i, 0, 0)),
                pl.BlockSpec((W, Wo), lambda i: (0, 0)),
            ],
            out_specs=pl.BlockSpec((1, Ho, Wo), lambda i: (i, 0, 0)),
        ),
        compiler_params=pltpu.CompilerParams(dimension_semantics=("parallel",)),
    )(A, planes, B)
    return out.reshape(N, C, Ho, Wo)


# ----------------------------------------------------------------------------
# Public wrapper: Pallas equivalent of CplxAvgPool2d.forward (complex NCHW).
# ----------------------------------------------------------------------------
@functools.partial(jax.jit, static_argnames=("kernel_size", "stride"))
def cplx_avg_pool2d(x, *, kernel_size, stride=None):
    k = kernel_size
    s = kernel_size if stride is None else stride
    N, C, H, W = x.shape
    Ho = (H - k) // s + 1
    Wo = (W - k) // s + 1

    xr = jnp.real(x).astype(jnp.float32)
    xi = jnp.imag(x).astype(jnp.float32)

    if s != k:
        # Overlapping / gapped pooling: keep the MXU banded-matrix fallback.
        return jax.lax.complex(_avg_pool_matmul(xr, k, s, Ho, Wo),
                               _avg_pool_matmul(xi, k, s, Ho, Wo))

    # ---- Fast non-overlapping path -----------------------------------------
    P = N * C
    Hu, Wu = Ho * k, Wo * k

    def to_channels_last(v):
        v = v.reshape(P, H, W)[:, :Hu, :Wu]       # crop (AvgPool2d floor mode)
        v = jnp.transpose(v, (1, 2, 0))           # (Hu, Wu, P) channels-last
        return v.reshape(Ho, k, Wo, k * P)        # free (contiguous) reshapes

    xr_cl = to_channels_last(xr)
    xi_cl = to_channels_last(xi)

    Hob = _choose_row_block(Ho, k, Wo, P)
    grid = (Ho // Hob,)

    in_spec = pl.BlockSpec((Hob, k, Wo, k * P), lambda i: (i, 0, 0, 0))
    out_spec = pl.BlockSpec((Hob, Wo, P), lambda i: (i, 0, 0))

    kernel = functools.partial(_pool_nonoverlap_kernel, k=k, P=P)
    out_r, out_i = pl.pallas_call(
        kernel,
        out_shape=(jax.ShapeDtypeStruct((Ho, Wo, P), jnp.float32),
                   jax.ShapeDtypeStruct((Ho, Wo, P), jnp.float32)),
        grid_spec=pltpu.PrefetchScalarGridSpec(
            num_scalar_prefetch=0,
            grid=grid,
            in_specs=[in_spec, in_spec],
            out_specs=(out_spec, out_spec),
        ),
        compiler_params=pltpu.CompilerParams(
            dimension_semantics=("parallel",),
        ),
    )(xr_cl, xi_cl)

    def from_channels_last(v):                    # (Ho, Wo, P) -> (N, C, Ho, Wo)
        return jnp.transpose(v, (2, 0, 1)).reshape(N, C, Ho, Wo)

    return jax.lax.complex(from_channels_last(out_r), from_channels_last(out_i))


# ----------------------------------------------------------------------------
# Pure-JAX reference (floor-mode AvgPool2d on a real NCHW array).
# ----------------------------------------------------------------------------
def _ref_avg_pool(x_real, k, s):
    N, C, H, W = x_real.shape
    Ho = (H - k) // s + 1
    Wo = (W - k) // s + 1
    acc = jnp.zeros((N, C, Ho, Wo), jnp.float32)
    for di in range(k):
        for dj in range(k):
            acc = acc + jax.lax.slice(
                x_real,
                (0, 0, di, dj),
                (N, C, di + (Ho - 1) * s + 1, dj + (Wo - 1) * s + 1),
                (1, 1, s, s),
            )
    return acc / float(k * k)


if __name__ == "__main__":
    key = jax.random.PRNGKey(0)
    k1, k2 = jax.random.split(key)
    N, C, H, W = 2, 4, 16, 16
    xr = jax.random.normal(k1, (N, C, H, W), dtype=jnp.float32)
    xi = jax.random.normal(k2, (N, C, H, W), dtype=jnp.float32)
    x = jax.lax.complex(xr, xi)  # complex64, NCHW

    kernel_size = 2
    out = cplx_avg_pool2d(x, kernel_size=kernel_size)
    out = jax.block_until_ready(out)

    ref = jax.lax.complex(
        _ref_avg_pool(xr, kernel_size, kernel_size),
        _ref_avg_pool(xi, kernel_size, kernel_size),
    )
    assert out.shape == (N, C, H // kernel_size, W // kernel_size)
    assert out.dtype == jnp.complex64
    assert jnp.allclose(out, ref, atol=1e-5, rtol=1e-5)

    print("KERNEL_OK")
</pallas_src>

<mosaic_0001>
module attributes {stable_mosaic.version = 11 : i64} {
  func.func @_pool_nonoverlap_kernel(%arg0: i32, %arg1: memref<4x2x8x16xf32, #tpu.memory_space<vmem>>, %arg2: memref<4x2x8x16xf32, #tpu.memory_space<vmem>>, %arg3: memref<4x8x8xf32, #tpu.memory_space<vmem>>, %arg4: memref<4x8x8xf32, #tpu.memory_space<vmem>>) attributes {dimension_semantics = [#tpu.dimension_semantics<parallel>], iteration_bounds = array<i64: 2>, scalar_prefetch = 0 : i64, scratch_operands = 0 : i64, tpu.core_type = #tpu.core_type<tc>, window_params = [{transform_indices = @transform_0, window_bounds = array<i64: 4, 2, 8, 16>}, {transform_indices = @transform_1, window_bounds = array<i64: 4, 2, 8, 16>}, {transform_indices = @transform_2, window_bounds = array<i64: 4, 8, 8>}, {transform_indices = @transform_3, window_bounds = array<i64: 4, 8, 8>}]} {
    %c0 = arith.constant 0 : index
    %c0_0 = arith.constant 0 : index
    %c0_1 = arith.constant 0 : index
    %c0_2 = arith.constant 0 : index
    %0 = vector.load %arg1[%c0, %c0_0, %c0_1, %c0_2] : memref<4x2x8x16xf32, #tpu.memory_space<vmem>>, vector<4x2x8x16xf32>
    %1 = vector.extract_strided_slice %0 {offsets = [0, 0, 0, 0], sizes = [4, 1, 8, 16], strides = [1, 1, 1, 1]} : vector<4x2x8x16xf32> to vector<4x1x8x16xf32>
    %2 = vector.shape_cast %1 : vector<4x1x8x16xf32> to vector<4x8x16xf32>
    %3 = vector.extract_strided_slice %0 {offsets = [0, 1, 0, 0], sizes = [4, 1, 8, 16], strides = [1, 1, 1, 1]} : vector<4x2x8x16xf32> to vector<4x1x8x16xf32>
    %4 = vector.shape_cast %3 : vector<4x1x8x16xf32> to vector<4x8x16xf32>
    %5 = arith.addf %2, %4 : vector<4x8x16xf32>
    %6 = vector.extract_strided_slice %5 {offsets = [0, 0, 0], sizes = [4, 8, 8], strides = [1, 1, 1]} : vector<4x8x16xf32> to vector<4x8x8xf32>
    %7 = vector.extract_strided_slice %5 {offsets = [0, 0, 8], sizes = [4, 8, 8], strides = [1, 1, 1]} : vector<4x8x16xf32> to vector<4x8x8xf32>
    %8 = arith.addf %6, %7 : vector<4x8x8xf32>
    %cst = arith.constant 2.500000e-01 : f32
    %9 = vector.broadcast %cst : f32 to vector<4x8x8xf32>
    %10 = arith.mulf %8, %9 : vector<4x8x8xf32>
    %c0_3 = arith.constant 0 : index
    %c0_4 = arith.constant 0 : index
    %c0_5 = arith.constant 0 : index
    %11 = vector.load %arg3[%c0_3, %c0_4, %c0_5] : memref<4x8x8xf32, #tpu.memory_space<vmem>>, vector<4x8x8xf32>
    tpu.vector_store %arg3[%c0_3, %c0_4, %c0_5], %10 {strides = array<i32>} : memref<4x8x8xf32, #tpu.memory_space<vmem>>, vector<4x8x8xf32>,
    %c0_6 = arith.constant 0 : index
    %c0_7 = arith.constant 0 : index
    %c0_8 = arith.constant 0 : index
    %c0_9 = arith.constant 0 : index
    %12 = vector.load %arg2[%c0_6, %c0_7, %c0_8, %c0_9] : memref<4x2x8x16xf32, #tpu.memory_space<vmem>>, vector<4x2x8x16xf32>
    %13 = vector.extract_strided_slice %12 {offsets = [0, 0, 0, 0], sizes = [4, 1, 8, 16], strides = [1, 1, 1, 1]} : vector<4x2x8x16xf32> to vector<4x1x8x16xf32>
    %14 = vector.shape_cast %13 : vector<4x1x8x16xf32> to vector<4x8x16xf32>
    %15 = vector.extract_strided_slice %12 {offsets = [0, 1, 0, 0], sizes = [4, 1, 8, 16], strides = [1, 1, 1, 1]} : vector<4x2x8x16xf32> to vector<4x1x8x16xf32>
    %16 = vector.shape_cast %15 : vector<4x1x8x16xf32> to vector<4x8x16xf32>
    %17 = arith.addf %14, %16 : vector<4x8x16xf32>
    %18 = vector.extract_strided_slice %17 {offsets = [0, 0, 0], sizes = [4, 8, 8], strides = [1, 1, 1]} : vector<4x8x16xf32> to vector<4x8x8xf32>
    %19 = vector.extract_strided_slice %17 {offsets = [0, 0, 8], sizes = [4, 8, 8], strides = [1, 1, 1]} : vector<4x8x16xf32> to vector<4x8x8xf32>
    %20 = arith.addf %18, %19 : vector<4x8x8xf32>
    %cst_10 = arith.constant 2.500000e-01 : f32
    %21 = vector.broadcast %cst_10 : f32 to vector<4x8x8xf32>
    %22 = arith.mulf %20, %21 : vector<4x8x8xf32>
    %c0_11 = arith.constant 0 : index
    %c0_12 = arith.constant 0 : index
    %c0_13 = arith.constant 0 : index
    %23 = vector.load %arg4[%c0_11, %c0_12, %c0_13] : memref<4x8x8xf32, #tpu.memory_space<vmem>>, vector<4x8x8xf32>
    tpu.vector_store %arg4[%c0_11, %c0_12, %c0_13], %22 {strides = array<i32>} : memref<4x8x8xf32, #tpu.memory_space<vmem>>, vector<4x8x8xf32>,
    return
  }
  func.func @transform_0(%arg0: i32) -> (i32, i32, i32, i32) {
    %c0_i32 = arith.constant 0 : i32
    %c0_i32_0 = arith.constant 0 : i32
    %c0_i32_1 = arith.constant 0 : i32
    %c0_i32_2 = arith.constant 0 : i32
    return %arg0, %c0_i32, %c0_i32_0, %c0_i32_1 : i32, i32, i32, i32
  }
  func.func @transform_1(%arg0: i32) -> (i32, i32, i32, i32) {
    %c0_i32 = arith.constant 0 : i32
    %c0_i32_0 = arith.constant 0 : i32
    %c0_i32_1 = arith.constant 0 : i32
    %c0_i32_2 = arith.constant 0 : i32
    return %arg0, %c0_i32, %c0_i32_0, %c0_i32_1 : i32, i32, i32, i32
  }
  func.func @transform_2(%arg0: i32) -> (i32, i32, i32) {
    %c0_i32 = arith.constant 0 : i32
    %c0_i32_0 = arith.constant 0 : i32
    %c0_i32_1 = arith.constant 0 : i32
    return %arg0, %c0_i32, %c0_i32_0 : i32, i32, i32
  }
  func.func @transform_3(%arg0: i32) -> (i32, i32, i32) {
    %c0_i32 = arith.constant 0 : i32
    %c0_i32_0 = arith.constant 0 : i32
    %c0_i32_1 = arith.constant 0 : i32
    return %arg0, %c0_i32, %c0_i32_0 : i32, i32, i32
  }
}

</mosaic_0001>

<llo_original>
// kernel: custom-call
$region0: #{custom-call}
  %s0 = inlined_call_operand.hbm [shape: c64[2,4,16,16], index: 0, kind: input, shape index: {}]
  %s1 = inlined_call_operand.vmem [shape: f32[2,4,16,16], index: 1, kind: output, shape index: {}]
  $region1: #{custom-call} parent=0
    #allocation0 [shape = 's32[1]{0}', space=sflag, size = 0x4, scoped, tag = 'scoped memory for custom-call']
    %2 = vsyncpa [#allocation0], 0
    %s3 = sshll.u32 %s1, 4
    %s4 = int_to_ptr.vmem [resolvable:$true] %s3
    %6 = dma.hbm_to_vmem [thread:$0]  %s0, 2048, %s4, [#allocation0]
    %7 = dma.done [#allocation0], 2048
    %8 = vsyncpa [#allocation0], 1

// kernel: custom-call.1
$region0: #{custom-call.1}
  %s0 = inlined_call_operand.hbm [shape: c64[2,4,16,16], index: 0, kind: input, shape index: {}]
  %s1 = inlined_call_operand.vmem [shape: f32[2,4,16,16], index: 1, kind: output, shape index: {}]
  %s2 = scalar_lea.hbm %s0, 2048
  $region1: #{custom-call.1} parent=0
    #allocation0 [shape = 's32[1]{0}', space=sflag, size = 0x4, scoped, tag = 'scoped memory for custom-call.1']
    %3 = vsyncpa [#allocation0], 0
    %s4 = sshll.u32 %s1, 4
    %s5 = int_to_ptr.vmem [resolvable:$true] %s4
    %7 = dma.hbm_to_vmem [thread:$0]  %s2, 2048, %s5, [#allocation0]
    %8 = dma.done [#allocation0], 2048
    %9 = vsyncpa [#allocation0], 1

// kernel: custom-call.2
$region0: #{custom-call.2}
  %s0 = inlined_call_operand.vmem [shape: f32[2,4,8,8], index: 0, kind: input, shape index: {}]
  %s1 = inlined_call_operand.vmem [shape: f32[2,4,8,8], index: 1, kind: input, shape index: {}]
  %s2 = inlined_call_operand.hbm [shape: c64[2,4,8,8], index: 2, kind: output, shape index: {}]
  %s3 = scalar_lea.hbm %s2, 1024
  $region1: #{custom-call.2} parent=0
    #allocation0 [shape = 's32[1]{0}', space=sflag, size = 0x4, scoped, tag = 'scoped memory for custom-call.2']
    %4 = vsyncpa [#allocation0], 0
    %s5 = sshll.u32 %s0, 4
    %s6 = int_to_ptr.vmem [resolvable:$true] %s5
    %8 = dma.vmem_to_hbm [thread:$0]  %s6, 1024, %s2, [#allocation0]
    %9 = dma.done [#allocation0], 1024
    %10 = vsyncpa [#allocation0], 1
  $region2: #{custom-call.2} parent=0
    #allocation1 [shape = 's32[1]{0}', space=sflag, size = 0x4, scoped, tag = 'scoped memory for custom-call.2']
    %11 = vsyncpa [#allocation1], 0
    %s12 = sshll.u32 %s1, 4
    %s13 = int_to_ptr.vmem [resolvable:$true] %s12
    %15 = dma.vmem_to_hbm [thread:$0]  %s13, 1024, %s3, [#allocation1]
    %16 = dma.done [#allocation1], 1024
    %17 = vsyncpa [#allocation1], 1

// kernel: cplx_avg_pool2d.1
$region0: #{cplx_avg_pool2d.1}
  #allocation0 [shape = 'u32[]', space=smem, size = 0x4, offset = 0x4, fixed_abs, tag = 'smem constant byte address 0x4 - core index']
  #allocation1 [shape = 'u32[144,128]{1,0:T(1,128)}', space=vmem, size = 0x12000, scoped, tag = 'internal scratch']
  %s0 = inlined_call_operand.vmem [shape: f32[8,2,8,16], index: 0, kind: input, shape index: {}]
  %s1 = inlined_call_operand.vmem [shape: f32[8,2,8,16], index: 1, kind: input, shape index: {}]
  %s2 = inlined_call_operand.vmem [shape: f32[8,8,8], index: 2, kind: output, shape index: {0}]
  %s3 = inlined_call_operand.vmem [shape: f32[8,8,8], index: 3, kind: output, shape index: {1}]
  %4 = xla_tuple %s2, %s3
  %s5 = sld [smem:[#allocation0]]
  $region49: #{cplx_avg_pool2d.1} parent=0
    _
  %s7 = ssub.s32 1, %s5
  %s8 = scalar_select 0, %s7, %s5
  loop: start=0, step=1, limit=4
  $region2: #{cplx_avg_pool2d.1} parent=0 // loop_pre_header
    _
  $region3: #{cplx_avg_pool2d.1} parent=0 // loop_header
    %s10 = sphi 0, %s14
    %p11 = scmp.ge.s32.totalorder %s10, 4
    %s20 = sphi 0, %s22
    %s23 = sphi 0, %s20
    %s24 = sphi 0, %s23
    %s40 = sphi 0, %s24
    %s46 = sphi 0, %s48
    %s49 = sphi 0, %s46
    %s50 = sphi 0, %s49
    %s66 = sphi 0, %s50
    %s72 = sphi 0, %s74
    %s75 = sphi 0, %s72
    %s76 = sphi 0, %s75
    %s92 = sphi 0, %s76
    %s98 = sphi 0, %s100
    %s101 = sphi 0, %s98
    %s102 = sphi 0, %s101
    %s118 = sphi 0, %s102
  $region4: #{cplx_avg_pool2d.1} parent=0 // loop_header_branch
    %13 = sbr.rel (%p11) target = $region8
  $region5: #{cplx_avg_pool2d.1} parent=0 // loop_body
    %s15 = ssub.s32 %s10, 1
    %s16 = ssub.s32 %s10, 2
    %s17 = sadd.s32 %s10, 1
    %s18 = ssub.s32 %s10, %s17
    %p19 = scmp.eq.s32.totalorder %s18, 0
    %s21 = sadd.s32 %s20, 1
    %s22 = scalar_select %p19, %s20, %s21
    %p25 = pneg %p19
    %p26 = scmp.eq.s32.totalorder %s10, 1
    %p27 = por %p25, %p26
    %p28 = scmp.ne.s32.totalorder %s20, %s23
    %p29 = scmp.eq.s32.totalorder %s10, 0
    %p30 = por %p28, %p29
    %p31 = scmp.ne.s32.totalorder %s20, %s23
    %p32 = scmp.eq.s32.totalorder %s15, 1
    %p33 = por %p31, %p32
    %p34 = scmp.ne.s32.totalorder %s23, %s24
    %p35 = scmp.eq.s32.totalorder %s15, 0
    %p36 = por %p34, %p35
    %p37 = scmp.ne.s32.totalorder %s23, %s24
    %p38 = scmp.eq.s32.totalorder %s16, 1
    %p39 = por %p37, %p38
    %p41 = scmp.ne.s32.totalorder %s24, %s40
    %p42 = scmp.eq.s32.totalorder %s16, 0
    %p43 = por %p41, %p42
    %s44 = ssub.s32 %s10, %s17
    %p45 = scmp.eq.s32.totalorder %s44, 0
    %s47 = sadd.s32 %s46, 1
    %s48 = scalar_select %p45, %s46, %s47
    %p51 = pneg %p45
    %p52 = scmp.eq.s32.totalorder %s10, 1
    %p53 = por %p51, %p52
    %p54 = scmp.ne.s32.totalorder %s46, %s49
    %p55 = scmp.eq.s32.totalorder %s10, 0
    %p56 = por %p54, %p55
    %p57 = scmp.ne.s32.totalorder %s46, %s49
    %p58 = scmp.eq.s32.totalorder %s15, 1
    %p59 = por %p57, %p58
    %p60 = scmp.ne.s32.totalorder %s49, %s50
    %p61 = scmp.eq.s32.totalorder %s15, 0
    %p62 = por %p60, %p61
    %p63 = scmp.ne.s32.totalorder %s49, %s50
    %p64 = scmp.eq.s32.totalorder %s16, 1
    %p65 = por %p63, %p64
    %p67 = scmp.ne.s32.totalorder %s50, %s66
    %p68 = scmp.eq.s32.totalorder %s16, 0
    %p69 = por %p67, %p68
    %s70 = ssub.s32 %s10, %s17
    %p71 = scmp.eq.s32.totalorder %s70, 0
    %s73 = sadd.s32 %s72, 1
    %s74 = scalar_select %p71, %s72, %s73
    %p77 = pneg %p71
    %p78 = scmp.eq.s32.totalorder %s10, 1
    %p79 = por %p77, %p78
    %p80 = scmp.ne.s32.totalorder %s72, %s75
    %p81 = scmp.eq.s32.totalorder %s10, 0
    %p82 = por %p80, %p81
    %p83 = scmp.ne.s32.totalorder %s72, %s75
    %p84 = scmp.eq.s32.totalorder %s15, 1
    %p85 = por %p83, %p84
    %p86 = scmp.ne.s32.totalorder %s75, %s76
    %p87 = scmp.eq.s32.totalorder %s15, 0
    %p88 = por %p86, %p87
    %p89 = scmp.ne.s32.totalorder %s75, %s76
    %p90 = scmp.eq.s32.totalorder %s16, 1
    %p91 = por %p89, %p90
    %p93 = scmp.ne.s32.totalorder %s76, %s92
    %p94 = scmp.eq.s32.totalorder %s16, 0
    %p95 = por %p93, %p94
    %s96 = ssub.s32 %s10, %s17
    %p97 = scmp.eq.s32.totalorder %s96, 0
    %s99 = sadd.s32 %s98, 1
    %s100 = scalar_select %p97, %s98, %s99
    %p103 = pneg %p97
    %p104 = scmp.eq.s32.totalorder %s10, 1
    %p105 = por %p103, %p104
    %p106 = scmp.ne.s32.totalorder %s98, %s101
    %p107 = scmp.eq.s32.totalorder %s10, 0
    %p108 = por %p106, %p107
    %p109 = scmp.ne.s32.totalorder %s98, %s101
    %p110 = scmp.eq.s32.totalorder %s15, 1
    %p111 = por %p109, %p110
    %p112 = scmp.ne.s32.totalorder %s101, %s102
    %p113 = scmp.eq.s32.totalorder %s15, 0
    %p114 = por %p112, %p113
    %p115 = scmp.ne.s32.totalorder %s101, %s102
    %p116 = scmp.eq.s32.totalorder %s16, 1
    %p117 = por %p115, %p116
    %p119 = scmp.ne.s32.totalorder %s102, %s118
    %p120 = scmp.eq.s32.totalorder %s16, 0
    %p121 = por %p119, %p120
    %p122 = scmp.le.s32.totalorder 1, %s10
    %p123 = scmp.lt.s32.totalorder %s10, 3
    %p124 = pnand %p122, %p123
    %p125 = pneg %p124
    // Predicated region
    $region9: #{cplx_avg_pool2d.1} parent=5 // pred_check
      _
    $region10: #{cplx_avg_pool2d.1} parent=5 // pred_check_branch
      %127 = sbr.rel (%p124) target = $region12
    $region11: #{cplx_avg_pool2d.1} parent=5 // pred_region
      %s128 = ssub.s32 %s10, 1
    $region12: #{cplx_avg_pool2d.1} parent=5 // pred_fallthru
      _
    %p129 = scmp.lt.s32.totalorder %s10, 2
    // Predicated region
    $region13: #{cplx_avg_pool2d.1} parent=5 // pred_check
      %p130 = pneg %p129
    $region14: #{cplx_avg_pool2d.1} parent=5 // pred_check_branch
      %132 = sbr.rel (%p130) target = $region16
    $region15: #{cplx_avg_pool2d.1} parent=5 // pred_region
      // Predicated region
      $region17: #{cplx_avg_pool2d.1} parent=15 // pred_check
        %p133 = pneg %p30
      $region18: #{cplx_avg_pool2d.1} parent=15 // pred_check_branch
        %135 = sbr.rel (%p133) target = $region20
      $region19: #{cplx_avg_pool2d.1} parent=15 // pred_region
        %s136 = smul.u32 4, %s10
        %p137 = scmp.lt.s32.totalorder %s136, 7
        %s138 = scalar_select %p137, %s136, 7
        %s139 = smul.addr %s138, 2
        %s140 = smul.addr %s139, 8
        %s141 = scalar_lea.vmem %s0, %s140
        %s142 = smul.u32 4, %s10
      $region20: #{cplx_avg_pool2d.1} parent=15 // pred_fallthru
        _
      // Predicated region
      $region21: #{cplx_avg_pool2d.1} parent=15 // pred_check
        %p143 = pneg %p56
      $region22: #{cplx_avg_pool2d.1} parent=15 // pred_check_branch
        %145 = sbr.rel (%p143) target = $region24
      $region23: #{cplx_avg_pool2d.1} parent=15 // pred_region
        %s146 = smul.u32 4, %s10
        %p147 = scmp.lt.s32.totalorder %s146, 7
        %s148 = scalar_select %p147, %s146, 7
        %s149 = smul.addr %s148, 2
        %s150 = smul.addr %s149, 8
        %s151 = scalar_lea.vmem %s1, %s150
        %s152 = smul.u32 4, %s10
      $region24: #{cplx_avg_pool2d.1} parent=15 // pred_fallthru
        _
    $region16: #{cplx_avg_pool2d.1} parent=5 // pred_fallthru
      _
    %p153 = scmp.le.s32.totalorder 1, %s10
    %p154 = scmp.lt.s32.totalorder %s10, 3
    %p155 = pnand %p153, %p154
    %p156 = pneg %p155
    // Predicated region
    $region25: #{cplx_avg_pool2d.1} parent=5 // pred_check
      _
    $region26: #{cplx_avg_pool2d.1} parent=5 // pred_check_branch
      %158 = sbr.rel (%p155) target = $region28
    $region27: #{cplx_avg_pool2d.1} parent=5 // pred_region
      %s159 = ssub.s32 %s10, 1
      %s160 = smul.u32 4, %s15
      %p161 = scmp.lt.s32.totalorder %s160, 7
      %s162 = scalar_select %p161, %s160, 7
      %s163 = smul.addr %s162, 2
      %s164 = smul.addr %s163, 8
      %s165 = scalar_lea.vmem %s0, %s164
      %p166 = pneg %p36
      %p167 = pneg %p33
      %s168 = smul.u32 4, %s15
      %p169 = scmp.lt.s32.totalorder %s168, 7
      %s170 = scalar_select %p169, %s168, 7
      %s171 = smul.addr %s170, 2
      %s172 = smul.addr %s171, 8
      %s173 = scalar_lea.vmem %s1, %s172
      %p174 = pneg %p62
      %p175 = pneg %p59
      %p176 = pneg %p88
      %p177 = pneg %p85
      %s178 = smul.u32 4, %s15
      %p179 = scmp.lt.s32.totalorder %s178, 7
      %s180 = scalar_select %p179, %s178, 7
      %s181 = smul.addr %s180, 8
      %s182 = scalar_lea.vmem %s2, %s181
      %p183 = pneg %p114
      %p184 = pneg %p111
      %s185 = smul.u32 4, %s15
      %p186 = scmp.lt.s32.totalorder %s185, 7
      %s187 = scalar_select %p186, %s185, 7
      %s188 = smul.addr %s187, 8
      %s189 = scalar_lea.vmem %s3, %s188
      %s190 = smul.u32 4, %s15
      %p191 = scmp.lt.s32.totalorder %s190, 7
      %s192 = scalar_select %p191, %s190, 7
      %s193 = smul.addr %s192, 2
      %s194 = smul.addr %s193, 8
      %s195 = scalar_lea.vmem %s0, %s194
      %s196 = smul.u32 4, %s15
      %s197 = smul.u32 4, %s15
      %p198 = scmp.lt.s32.totalorder %s197, 7
      %s199 = scalar_select %p198, %s197, 7
      %s200 = smul.addr %s199, 2
      %s201 = smul.addr %s200, 8
      %s202 = scalar_lea.vmem %s1, %s201
      %s203 = smul.u32 4, %s15
      %s204 = smul.u32 4, %s15
      %p205 = scmp.lt.s32.totalorder %s204, 7
      %s206 = scalar_select %p205, %s204, 7
      %s207 = smul.addr %s206, 8
      %s208 = scalar_lea.vmem %s2, %s207
      %s209 = smul.u32 4, %s15
      %s210 = smul.u32 4, %s15
      %p211 = scmp.lt.s32.totalorder %s210, 7
      %s212 = scalar_select %p211, %s210, 7
      %s213 = smul.addr %s212, 8
      %s214 = scalar_lea.vmem %s3, %s213
      %s215 = smul.u32 4, %s15
      %v216 = vld [vmem:[%s195] sm:$0xff]
      %v217 = vld [vmem:[%s195 + $0x8] sm:$0xff]
      %v218 = vld [vmem:[%s195 + $0x10] sm:$0xff]
      %v219 = vld [vmem:[%s195 + $0x18] sm:$0xff]
      %v220 = vld [vmem:[%s195 + $0x20] sm:$0xff]
      %v221 = vld [vmem:[%s195 + $0x28] sm:$0xff]
      %v222 = vld [vmem:[%s195 + $0x30] sm:$0xff]
      %v223 = vld [vmem:[%s195 + $0x38] sm:$0xff]
      %v224 = vadd.f32 %v216, %v217
      %v225 = vadd.f32 %v218, %v219
      %v226 = vadd.f32 %v220, %v221
      %v227 = vadd.f32 %v222, %v223
      %232 = vrot.lane.b32.xlu0 %v224, 120
      %v233 = vpop.permute.xlu0 %232
      %234 = vrot.lane.b32.xlu0 %v225, 120
      %v235 = vpop.permute.xlu0 %234
      %236 = vrot.lane.b32.xlu0 %v226, 120
      %v237 = vpop.permute.xlu0 %236
      %238 = vrot.lane.b32.xlu0 %v227, 120
      %v239 = vpop.permute.xlu0 %238
      %v244 = vadd.f32 %v224, %v233
      %v245 = vadd.f32 %v225, %v235
      %v246 = vadd.f32 %v226, %v237
      %v247 = vadd.f32 %v227, %v239
      %v248 = vmul.f32 %v244, 0.25
      %v249 = vmul.f32 %v245, 0.25
      %v250 = vmul.f32 %v246, 0.25
      %v251 = vmul.f32 %v247, 0.25
      %vm252 = vcmask 64512
      %253 = vst.msk [vmem:[%s208] sm:$0xff] %vm252, %v248
      %254 = vst.msk [vmem:[%s208 + $0x8] sm:$0xff] %vm252, %v249
      %255 = vst.msk [vmem:[%s208 + $0x10] sm:$0xff] %vm252, %v250
      %256 = vst.msk [vmem:[%s208 + $0x18] sm:$0xff] %vm252, %v251
      %v257 = vld [vmem:[%s202] sm:$0xff]
      %v258 = vld [vmem:[%s202 + $0x8] sm:$0xff]
      %v259 = vld [vmem:[%s202 + $0x10] sm:$0xff]
      %v260 = vld [vmem:[%s202 + $0x18] sm:$0xff]
      %v261 = vld [vmem:[%s202 + $0x20] sm:$0xff]
      %v262 = vld [vmem:[%s202 + $0x28] sm:$0xff]
      %v263 = vld [vmem:[%s202 + $0x30] sm:$0xff]
      %v264 = vld [vmem:[%s202 + $0x38] sm:$0xff]
      %v265 = vadd.f32 %v257, %v258
      %v266 = vadd.f32 %v259, %v260
      %v267 = vadd.f32 %v261, %v262
      %v268 = vadd.f32 %v263, %v264
      %273 = vrot.lane.b32.xlu0 %v265, 120
      %v274 = vpop.permute.xlu0 %273
      %275 = vrot.lane.b32.xlu0 %v266, 120
      %v276 = vpop.permute.xlu0 %275
      %277 = vrot.lane.b32.xlu0 %v267, 120
      %v278 = vpop.permute.xlu0 %277
      %279 = vrot.lane.b32.xlu0 %v268, 120
      %v280 = vpop.permute.xlu0 %279
      %v285 = vadd.f32 %v265, %v274
      %v286 = vadd.f32 %v266, %v276
      %v287 = vadd.f32 %v267, %v278
      %v288 = vadd.f32 %v268, %v280
      %v289 = vmul.f32 %v285, 0.25
      %v290 = vmul.f32 %v286, 0.25
      %v291 = vmul.f32 %v287, 0.25
      %v292 = vmul.f32 %v288, 0.25
      %293 = vst.msk [vmem:[%s214] sm:$0xff] %vm252, %v289
      %294 = vst.msk [vmem:[%s214 + $0x8] sm:$0xff] %vm252, %v290
      %295 = vst.msk [vmem:[%s214 + $0x10] sm:$0xff] %vm252, %v291
      %296 = vst.msk [vmem:[%s214 + $0x18] sm:$0xff] %vm252, %v292
      %s297 = smul.u32 4, %s15
      %p298 = scmp.lt.s32.totalorder %s297, 7
      %s299 = scalar_select %p298, %s297, 7
      %s300 = smul.addr %s299, 8
      %s301 = scalar_lea.vmem %s2, %s300
      %s302 = smul.u32 4, %s15
      %p303 = scmp.lt.s32.totalorder %s302, 7
      %s304 = scalar_select %p303, %s302, 7
      %s305 = smul.addr %s304, 8
      %s306 = scalar_lea.vmem %s3, %s305
      // Predicated region
      $region29: #{cplx_avg_pool2d.1} parent=27 // pred_check
        %p307 = pneg %p85
      $region30: #{cplx_avg_pool2d.1} parent=27 // pred_check_branch
        %309 = sbr.rel (%p307) target = $region32
      $region31: #{cplx_avg_pool2d.1} parent=27 // pred_region
        %s310 = smul.u32 4, %s15
      $region32: #{cplx_avg_pool2d.1} parent=27 // pred_fallthru
        _
      // Predicated region
      $region33: #{cplx_avg_pool2d.1} parent=27 // pred_check
        %p311 = pneg %p111
      $region34: #{cplx_avg_pool2d.1} parent=27 // pred_check_branch
        %313 = sbr.rel (%p311) target = $region36
      $region35: #{cplx_avg_pool2d.1} parent=27 // pred_region
        %s314 = smul.u32 4, %s15
      $region36: #{cplx_avg_pool2d.1} parent=27 // pred_fallthru
        _
    $region28: #{cplx_avg_pool2d.1} parent=5 // pred_fallthru
      _
    %p315 = scmp.le.s32.totalorder 2, %s10
    // Predicated region
    $region37: #{cplx_avg_pool2d.1} parent=5 // pred_check
      %p316 = pneg %p315
    $region38: #{cplx_avg_pool2d.1} parent=5 // pred_check_branch
      %318 = sbr.rel (%p316) target = $region40
    $region39: #{cplx_avg_pool2d.1} parent=5 // pred_region
      %s319 = ssub.s32 %s10, 2
      // Predicated region
      $region41: #{cplx_avg_pool2d.1} parent=39 // pred_check
        %p320 = pneg %p91
      $region42: #{cplx_avg_pool2d.1} parent=39 // pred_check_branch
        %322 = sbr.rel (%p320) target = $region44
      $region43: #{cplx_avg_pool2d.1} parent=39 // pred_region
        %s323 = smul.u32 4, %s16
        %p324 = scmp.lt.s32.totalorder %s323, 7
        %s325 = scalar_select %p324, %s323, 7
        %s326 = smul.addr %s325, 8
        %s327 = scalar_lea.vmem %s2, %s326
      $region44: #{cplx_avg_pool2d.1} parent=39 // pred_fallthru
        _
      // Predicated region
      $region45: #{cplx_avg_pool2d.1} parent=39 // pred_check
        %p328 = pneg %p117
      $region46: #{cplx_avg_pool2d.1} parent=39 // pred_check_branch
        %330 = sbr.rel (%p328) target = $region48
      $region47: #{cplx_avg_pool2d.1} parent=39 // pred_region
        %s331 = smul.u32 4, %s16
        %p332 = scmp.lt.s32.totalorder %s331, 7
        %s333 = scalar_select %p332, %s331, 7
        %s334 = smul.addr %s333, 8
        %s335 = scalar_lea.vmem %s3, %s334
      $region48: #{cplx_avg_pool2d.1} parent=39 // pred_fallthru
        _
    $region40: #{cplx_avg_pool2d.1} parent=5 // pred_fallthru
      _
  $region6: #{cplx_avg_pool2d.1} parent=0 // loop_footer
    %s14 = sadd.s32 1, %s10
  $region7: #{cplx_avg_pool2d.1} parent=0 // loop_footer_branch
    %9 = sbr.rel target = $region3
  $region8: #{cplx_avg_pool2d.1} parent=0 // loop_exit
    _

</llo_original>
